<compile_context>
chip_gen: v7x
topology: tpu7x:2x2x1
jax: 0.10.0
libtpu: 0.0.40
codegen_flags: <defaults>
</compile_context>

<pallas_src>
import functools

import jax
import jax.numpy as jnp
from jax import lax
from jax.experimental import pallas as pl
from jax.experimental.pallas import tpu as pltpu


def _round_up(v, m):
    return ((v + m - 1) // m) * m


# ---------------------------------------------------------------------------
# Kernels
# ---------------------------------------------------------------------------
def _vector_right_v_kernel(x_ref, o_ref, *, thresh_sq):
    # x_ref: (D, TN) tile -- full reduction dim D resident, tile over lane cols.
    xf = x_ref[...].astype(jnp.float32)
    sq_sum = jnp.sum(xf * xf, axis=0, keepdims=True)            # (1, TN) f32 (XLU)
    inv_norm = lax.rsqrt(sq_sum)                                 # EUP
    # where(norm > normLim, x / norm, x) == x * where(sq > lim^2, rsqrt(sq), 1)
    # (not bit-identical to x / sqrt(sq) for norms within ~1 ulp of normLim).
    scale = jnp.where(sq_sum > thresh_sq, inv_norm, jnp.float32(1.0))
    o_ref[...] = (xf * scale).astype(o_ref.dtype)                # lane-dense store


def _sq_sum_kernel(x_ref, ss_ref, *, d_total, td):
    # Pass 1 of the tall-D fallback: accumulate per-column sum of squares.
    di = pl.program_id(1)

    @pl.when(di == 0)
    def _():
        ss_ref[...] = jnp.zeros_like(ss_ref)

    xf = x_ref[...].astype(jnp.float32)
    if d_total % td != 0:
        # Partial last D block: out-of-bounds sublane rows hold garbage on
        # read -- zero them before squaring so they cannot corrupt the sum.
        row = di * td + lax.broadcasted_iota(jnp.int32, xf.shape, 0)
        xf = jnp.where(row < d_total, xf, jnp.float32(0.0))
    ss_ref[...] += jnp.sum(xf * xf, axis=0, keepdims=True)


def _scale_kernel(x_ref, ss_ref, o_ref, *, thresh_sq):
    # Pass 2 of the tall-D fallback: re-stream x and apply the per-column scale.
    ss = ss_ref[...]
    scale = jnp.where(ss > thresh_sq, lax.rsqrt(ss), jnp.float32(1.0))
    o_ref[...] = (x_ref[...].astype(jnp.float32) * scale).astype(o_ref.dtype)


# ---------------------------------------------------------------------------
# Generation-aware sizing
# ---------------------------------------------------------------------------
def _chip_limits():
    """Best-effort (trace-time) query of physical VMEM and TensorCore count."""
    vmem_phys = None
    num_cores = 1
    try:
        info = pltpu.get_tpu_info()
        v = getattr(info, "vmem_capacity_bytes", None)
        if v:
            vmem_phys = int(v)
        for attr in ("num_cores", "tensorcore_count", "core_count", "num_tensorcores"):
            c = getattr(info, attr, None)
            if c:
                num_cores = max(num_cores, int(c))
                break
    except Exception:
        pass
    kind = ""
    try:
        kind = jax.devices()[0].device_kind.lower()
    except Exception:
        pass
    if "v7" in kind:
        num_cores = max(num_cores, 2)              # v7x: 2 TensorCores / chip
        if vmem_phys is None:
            vmem_phys = 64 * 1024 * 1024
    if vmem_phys is None:
        vmem_phys = 64 * 1024 * 1024               # unknown chip: assume smallest VMEM
    if vmem_phys >= 100 * 1024 * 1024:             # v5e / v6e: 128 MiB physical
        budget = 48 * 1024 * 1024
        vmem_limit = 64 * 1024 * 1024
    else:                                          # v7x: 64 MiB per TensorCore
        budget = 26 * 1024 * 1024
        vmem_limit = 48 * 1024 * 1024
    return budget, vmem_limit, num_cores


def _pick_lane_tile(d, n, itemsize, budget, num_cores, max_tile=32768):
    """Largest multiple-of-128 lane tile whose in+out double buffers plus f32
    temporaries fit the budget; None if even 128 lanes do not fit (-> two-pass)."""
    n128 = _round_up(max(n, 1), 128)
    per_lane = d * (4 * itemsize + 8)       # 2x in + 2x out buffers + ~2 f32 temps
    cap = (budget // per_lane // 128) * 128
    if cap < 128:
        return None
    max_tile = max(128, (int(max_tile) // 128) * 128)
    tn = max(128, min(cap, n128, max_tile))
    # Multi-TensorCore chips: give every core at least two blocks so each one
    # keeps double-buffering; single-TC chips skip the split (pure overhead).
    if num_cores >= 2:
        want = 2 * num_cores
        if pl.cdiv(n128, tn) < want and n128 >= want * 128:
            tn = max(128, _round_up(pl.cdiv(n128, want), 128))
    return tn


def _pick_two_pass_tiles(d, n, itemsize, budget):
    n128 = _round_up(max(n, 1), 128)
    tn = min(n128, 1024)
    per_row = tn * (4 * itemsize + 8)        # pass-2 buffers + f32 temps per sublane row
    td = (budget // per_row // 8) * 8
    td = max(8, min(td, _round_up(d, 8)))
    return td, tn


# ---------------------------------------------------------------------------
# Wrapper
# ---------------------------------------------------------------------------
def vector_right_v(right_v, norm_lim=1.0, *, force_two_pass=False, max_lane_tile=None):
    """Pallas re-implementation of Vector_right_V.forward."""
    orig_shape = right_v.shape
    d = orig_shape[0]
    x2d = right_v.reshape(d, -1)             # flatten non-reduced dims onto lanes
    n = x2d.shape[1]
    itemsize = jnp.dtype(right_v.dtype).itemsize

    # norm > norm_lim  <=>  sq_sum > norm_lim^2 (norm >= 0); a negative limit
    # is always exceeded, so use a negative squared threshold.
    nl = float(norm_lim)
    thresh_sq = nl * nl if nl >= 0.0 else -1.0

    budget, vmem_limit, num_cores = _chip_limits()

    tn = None
    if not force_two_pass:
        tn = _pick_lane_tile(d, n, itemsize, budget, num_cores,
                             max_tile=(max_lane_tile or 32768))

    if tn is not None:
        # Single pass: full D resident, stream wide lane tiles.  A partial last
        # block (n % tn != 0) is handled by Pallas' masked write-back -- no
        # pad / slice extra HBM passes.
        out2d = pl.pallas_call(
            functools.partial(_vector_right_v_kernel, thresh_sq=thresh_sq),
            out_shape=jax.ShapeDtypeStruct((d, n), right_v.dtype),
            grid_spec=pltpu.PrefetchScalarGridSpec(
                num_scalar_prefetch=0,
                grid=(pl.cdiv(n, tn),),
                in_specs=[pl.BlockSpec((d, tn), lambda j: (0, j))],
                out_specs=pl.BlockSpec((d, tn), lambda j: (0, j)),
            ),
            compiler_params=pltpu.CompilerParams(
                dimension_semantics=("parallel",),
                vmem_limit_bytes=vmem_limit,
            ),
        )(x2d)
        return out2d.reshape(orig_shape)

    # Tall-D fallback: two passes (3x traffic), D tiled.
    td, tn2 = _pick_two_pass_tiles(d, n, itemsize, budget)
    grid = (pl.cdiv(n, tn2), pl.cdiv(d, td))

    sq_sum = pl.pallas_call(
        functools.partial(_sq_sum_kernel, d_total=d, td=td),
        out_shape=jax.ShapeDtypeStruct((1, n), jnp.float32),
        grid_spec=pltpu.PrefetchScalarGridSpec(
            num_scalar_prefetch=0,
            grid=grid,
            in_specs=[pl.BlockSpec((td, tn2), lambda j, i: (i, j))],
            out_specs=pl.BlockSpec((1, tn2), lambda j, i: (0, j)),
        ),
        compiler_params=pltpu.CompilerParams(
            dimension_semantics=("parallel", "arbitrary"),
            vmem_limit_bytes=vmem_limit,
        ),
    )(x2d)

    out2d = pl.pallas_call(
        functools.partial(_scale_kernel, thresh_sq=thresh_sq),
        out_shape=jax.ShapeDtypeStruct((d, n), right_v.dtype),
        grid_spec=pltpu.PrefetchScalarGridSpec(
            num_scalar_prefetch=0,
            grid=grid,
            in_specs=[pl.BlockSpec((td, tn2), lambda j, i: (i, j)),
                      pl.BlockSpec((1, tn2), lambda j, i: (0, j))],
            out_specs=pl.BlockSpec((td, tn2), lambda j, i: (i, j)),
        ),
        compiler_params=pltpu.CompilerParams(
            dimension_semantics=("parallel", "parallel"),
            vmem_limit_bytes=vmem_limit,
        ),
    )(x2d, sq_sum)
    return out2d.reshape(orig_shape)


# ---------------------------------------------------------------------------
# Reference + tests
# ---------------------------------------------------------------------------
def _reference(right_v, norm_lim=1.0):
    norm = jnp.sqrt(jnp.sum(jnp.square(right_v), axis=0, keepdims=True))
    return jnp.where(norm > norm_lim, right_v / norm, right_v)


def _check(out, ref, name):
    assert out.shape == ref.shape, f"{name}: shape mismatch"
    assert jnp.allclose(out, ref, atol=1e-4, rtol=1e-4), f"{name}: mismatch vs reference"


if __name__ == "__main__":
    key = jax.random.PRNGKey(0)
    k1, k2, k3, k4, k5, k6 = jax.random.split(key, 6)

    # Test 1: D=32, N=256 -- single pass, single block; mix of norms > 1
    # (normalized) and <= 1 (untouched).
    base = jax.random.normal(k1, (32, 256), dtype=jnp.float32)
    scale = jax.random.uniform(k2, (1, 256), minval=0.01, maxval=0.5)
    x1 = base * scale
    out1 = jax.block_until_ready(vector_right_v(x1, norm_lim=1.0))
    _check(out1, _reference(x1, 1.0), "test1")

    # Test 2: N=200 (not a multiple of 128) -- masked partial block, no padding.
    x2 = jax.random.normal(k3, (16, 200), dtype=jnp.float32) * 0.3
    out2 = jax.block_until_ready(vector_right_v(x2, norm_lim=1.0))
    _check(out2, _reference(x2, 1.0), "test2")

    # Test 3: force a multi-step grid with a masked final block.
    x3 = jax.random.normal(k4, (32, 300), dtype=jnp.float32)
    out3 = jax.block_until_ready(vector_right_v(x3, norm_lim=1.0, max_lane_tile=128))
    _check(out3, _reference(x3, 1.0), "test3")

    # Test 4: tall-D two-pass fallback path (D not a multiple of 8 exercises
    # the in-kernel sublane mask).
    x4 = jax.random.normal(k5, (44, 200), dtype=jnp.float32)
    out4 = jax.block_until_ready(vector_right_v(x4, norm_lim=1.0, force_two_pass=True))
    _check(out4, _reference(x4, 1.0), "test4")

    # Test 5: >2-D input (trailing dims flattened onto lanes).
    x5 = jax.random.normal(k6, (8, 5, 26), dtype=jnp.float32) * 0.4
    out5 = jax.block_until_ready(vector_right_v(x5, norm_lim=1.0))
    _check(out5, _reference(x5, 1.0), "test5")

    print("KERNEL_OK")
</pallas_src>

<mosaic_0001>
module attributes {stable_mosaic.version = 11 : i64} {
  func.func @_vector_right_v_kernel(%arg0: i32, %arg1: memref<32x256xf32, #tpu.memory_space<vmem>>, %arg2: memref<32x256xf32, #tpu.memory_space<vmem>>) attributes {dimension_semantics = [#tpu.dimension_semantics<parallel>], iteration_bounds = array<i64: 1>, scalar_prefetch = 0 : i64, scratch_operands = 0 : i64, tpu.core_type = #tpu.core_type<tc>, window_params = [{transform_indices = @transform_0, window_bounds = array<i64: 32, 256>}, {transform_indices = @transform_1, window_bounds = array<i64: 32, 256>}]} {
    %c0 = arith.constant 0 : index
    %c0_0 = arith.constant 0 : index
    %0 = vector.load %arg1[%c0, %c0_0] : memref<32x256xf32, #tpu.memory_space<vmem>>, vector<32x256xf32>
    %1 = arith.mulf %0, %0 : vector<32x256xf32>
    %cst = arith.constant dense<0.000000e+00> : vector<256xf32>
    %2 = vector.multi_reduction <add>, %1, %cst [0] : vector<32x256xf32> to vector<256xf32>
    %3 = vector.shape_cast %2 : vector<256xf32> to vector<1x256xf32>
    %4 = math.rsqrt %3 : vector<1x256xf32>
    %cst_1 = arith.constant 1.000000e+00 : f32
    %5 = vector.broadcast %cst_1 : f32 to vector<1x256xf32>
    %6 = arith.cmpf ogt, %3, %5 : vector<1x256xf32>
    %cst_2 = arith.constant 1.000000e+00 : f32
    %7 = vector.broadcast %cst_2 : f32 to vector<1x256xf32>
    %8 = arith.select %6, %4, %7 : vector<1x256xi1>, vector<1x256xf32>
    %9 = vector.broadcast %8 : vector<1x256xf32> to vector<32x256xf32>
    %10 = arith.mulf %0, %9 : vector<32x256xf32>
    %c0_3 = arith.constant 0 : index
    %c0_4 = arith.constant 0 : index
    %11 = vector.load %arg2[%c0_3, %c0_4] : memref<32x256xf32, #tpu.memory_space<vmem>>, vector<32x256xf32>
    tpu.vector_store %arg2[%c0_3, %c0_4], %10 {strides = array<i32>} : memref<32x256xf32, #tpu.memory_space<vmem>>, vector<32x256xf32>,
    return
  }
  func.func @transform_0(%arg0: i32) -> (i32, i32) {
    %c0_i32 = arith.constant 0 : i32
    %c0_i32_0 = arith.constant 0 : i32
    return %c0_i32, %arg0 : i32, i32
  }
  func.func @transform_1(%arg0: i32) -> (i32, i32) {
    %c0_i32 = arith.constant 0 : i32
    %c0_i32_0 = arith.constant 0 : i32
    return %c0_i32, %arg0 : i32, i32
  }
}

</mosaic_0001>

<llo_original>
// kernel: tpu_custom_call.1
$region0: #{tpu_custom_call.1}
  #allocation0 [shape = 'u32[]', space=smem, size = 0x4, offset = 0x4, fixed_abs, tag = 'smem constant byte address 0x4 - core index']
  #allocation1 [shape = 'u32[144,128]{1,0:T(1,128)}', space=vmem, size = 0x12000, scoped, tag = 'internal scratch']
  %s0 = inlined_call_operand.hbm [shape: f32[32,256], index: 0, kind: input, shape index: {}]
  %s1 = inlined_call_operand.hbm [shape: f32[32,256], index: 1, kind: output, shape index: {}]
  %s2 = sld [smem:[#allocation0]]
  $region18: #{tpu_custom_call.1} parent=0
    _
  %s4 = ssub.s32 1, %s2
  %s5 = scalar_select 0, %s4, %s2
  $region1: #{tpu_custom_call.1} parent=0
    #allocation2 [shape = 'u8[32768]{0}', space=vmem, size = 0x8000, scoped, tag = 'input window, operand 0, single buffered']
    #allocation3 [shape = 's32[1]{0}', space=sflag, size = 0x4, scoped, tag = 'scoped memory for tpu_custom_call.1']
    #allocation4 [shape = 's32[1]{0}', space=sflag, size = 0x4, scoped, tag = 'scoped memory for tpu_custom_call.1']
    #allocation5 [shape = 'u8[32768]{0}', space=vmem, size = 0x8000, scoped, tag = 'output window, operand 0, single buffered']
    %6 = vsyncpa [#allocation3], 0
    %7 = vsyncpa [#allocation4], 0
    // Predicated region
    $region2: #{tpu_custom_call.1} parent=1 // pred_check
      _
    $region3: #{tpu_custom_call.1} parent=1 // pred_check_branch
      %9 = sbr.rel (0) target = $region5
    $region4: #{tpu_custom_call.1} parent=1 // pred_region
      %s11 = ssub.s32 1024, 1024
      %12 = vsyncadd [#allocation3], %s11
      %s13 = sshll.u32 [#allocation2], 4
      %s14 = int_to_ptr.vmem [resolvable:$true] %s13
      %19 = dma.hbm_to_vmem [thread:$0]  %s0, 1024, %s14, [#allocation3], 256, 256, 16
    $region5: #{tpu_custom_call.1} parent=1 // pred_fallthru
      _
    // Predicated region
    $region6: #{tpu_custom_call.1} parent=1 // pred_check
      _
    $region7: #{tpu_custom_call.1} parent=1 // pred_check_branch
      %21 = sbr.rel (0) target = $region9
    $region8: #{tpu_custom_call.1} parent=1 // pred_region
      %22 = dma.done [#allocation3], 1024
    $region9: #{tpu_custom_call.1} parent=1 // pred_fallthru
      _
    %v23 = vld [vmem:[#allocation2] sm:$0xff]
    %v24 = vld [vmem:[#allocation2 + $0x8] sm:$0xff]
    %v25 = vld [vmem:[#allocation2 + $0x10] sm:$0xff]
    %v26 = vld [vmem:[#allocation2 + $0x18] sm:$0xff]
    %v27 = vld [vmem:[#allocation2 + $0x20] sm:$0xff]
    %v28 = vld [vmem:[#allocation2 + $0x28] sm:$0xff]
    %v29 = vld [vmem:[#allocation2 + $0x30] sm:$0xff]
    %v30 = vld [vmem:[#allocation2 + $0x38] sm:$0xff]
    %v31 = vmul.f32 %v23, %v23
    %v32 = vmul.f32 %v24, %v24
    %v33 = vmul.f32 %v25, %v25
    %v34 = vmul.f32 %v26, %v26
    %v35 = vmul.f32 %v27, %v27
    %v36 = vmul.f32 %v28, %v28
    %v37 = vmul.f32 %v29, %v29
    %v38 = vmul.f32 %v30, %v30
    %v39 = vadd.f32 %v31, %v33
    %v40 = vadd.f32 %v39, %v35
    %v41 = vadd.f32 %v40, %v37
    %v42 = vrot.slane %v41, 4
    %v43 = vadd.f32 %v41, %v42
    %v44 = vrot.slane %v43, 2
    %v45 = vadd.f32 %v43, %v44
    %v46 = vrot.slane %v45, 1
    %v47 = vadd.f32 %v45, %v46
    %v48 = vadd.f32 %v32, %v34
    %v49 = vadd.f32 %v48, %v36
    %v50 = vadd.f32 %v49, %v38
    %v51 = vrot.slane %v50, 4
    %v52 = vadd.f32 %v50, %v51
    %v53 = vrot.slane %v52, 2
    %v54 = vadd.f32 %v52, %v53
    %v55 = vrot.slane %v54, 1
    %v56 = vadd.f32 %v54, %v55
    %v57 = vrsqrt.pop %v47
    %v58 = vrsqrt.pop %v56
    %vm59 = vcmp.gt.f32.partialorder %v47, 1.0
    %vm60 = vcmp.gt.f32.partialorder %v56, 1.0
    %v61 = vsel %vm59, %v57, 1.0
    %v62 = vsel %vm60, %v58, 1.0
    %v63 = vmul.f32 %v23, %v61
    %v64 = vmul.f32 %v24, %v62
    %v65 = vmul.f32 %v25, %v61
    %v66 = vmul.f32 %v26, %v62
    %v67 = vmul.f32 %v27, %v61
    %v68 = vmul.f32 %v28, %v62
    %v69 = vmul.f32 %v29, %v61
    %v70 = vmul.f32 %v30, %v62
    %71 = vst [vmem:[#allocation5] sm:$0xff] %v63
    %72 = vst [vmem:[#allocation5 + $0x8] sm:$0xff] %v64
    %73 = vst [vmem:[#allocation5 + $0x10] sm:$0xff] %v65
    %74 = vst [vmem:[#allocation5 + $0x18] sm:$0xff] %v66
    %75 = vst [vmem:[#allocation5 + $0x20] sm:$0xff] %v67
    %76 = vst [vmem:[#allocation5 + $0x28] sm:$0xff] %v68
    %77 = vst [vmem:[#allocation5 + $0x30] sm:$0xff] %v69
    %78 = vst [vmem:[#allocation5 + $0x38] sm:$0xff] %v70
    // Predicated region
    $region10: #{tpu_custom_call.1} parent=1 // pred_check
      _
    $region11: #{tpu_custom_call.1} parent=1 // pred_check_branch
      %80 = sbr.rel (0) target = $region13
    $region12: #{tpu_custom_call.1} parent=1 // pred_region
      %s82 = ssub.s32 1024, 1024
      %83 = vsyncadd [#allocation4], %s82
      %s84 = sshll.u32 [#allocation5], 4
      %s85 = int_to_ptr.vmem [resolvable:$true] %s84
      %90 = dma.vmem_to_hbm [thread:$0]  %s85, 1024, %s1, [#allocation4], 256, 256, 16
    $region13: #{tpu_custom_call.1} parent=1 // pred_fallthru
      _
    // Predicated region
    $region14: #{tpu_custom_call.1} parent=1 // pred_check
      _
    $region15: #{tpu_custom_call.1} parent=1 // pred_check_branch
      %92 = sbr.rel (0) target = $region17
    $region16: #{tpu_custom_call.1} parent=1 // pred_region
      %93 = dma.done [#allocation4], 1024
    $region17: #{tpu_custom_call.1} parent=1 // pred_fallthru
      _
    %94 = vsyncpa [#allocation3], 1
    %95 = vsyncpa [#allocation4], 1

</llo_original>
